<compile_context>
chip_gen: v7x
topology: tpu7x:2x2x1
jax: 0.10.0
libtpu: 0.0.40
codegen_flags: <defaults>
</compile_context>

<pallas_src>
import functools

import jax
import jax.numpy as jnp
from jax import lax
from jax.experimental import pallas as pl
from jax.experimental.pallas import tpu as pltpu


def _cross_attn_kernel(x1_ref, x2_ref, wq_ref, wkv_ref, wo_ref, b_ref, o_ref,
                       *, num_heads, k_dim, v_dim):
    bf16 = jnp.bfloat16
    x1 = x1_ref[0]          # (S1, D1)  bf16
    x2 = x2_ref[0]          # (S2, D2)  bf16

    # Fused projections: one wide matmul for Q, one for [K|V] (all heads).
    q_all = jnp.dot(x1, wq_ref[...], preferred_element_type=jnp.float32)    # (S1, H*K)
    kv_all = jnp.dot(x2, wkv_ref[...], preferred_element_type=jnp.float32)  # (S2, H*(K+V))

    hk = num_heads * k_dim
    scale = 1.0 / (k_dim ** 0.5)

    ctx_parts = []
    for h in range(num_heads):  # H is small & static -> unrolled
        q_h = q_all[:, h * k_dim:(h + 1) * k_dim]                 # (S1, K) f32
        k_h = kv_all[:, h * k_dim:(h + 1) * k_dim]                # (S2, K) f32
        v_h = kv_all[:, hk + h * v_dim: hk + (h + 1) * v_dim]     # (S2, V) f32

        # scores = q @ k^T without an explicit transpose (contract on K).
        scores = lax.dot_general(
            q_h.astype(bf16), k_h.astype(bf16),
            dimension_numbers=(((1,), (1,)), ((), ())),
            preferred_element_type=jnp.float32) * scale           # (S1, S2) f32

        # Numerically-stable softmax in f32; normalization applied after p@v.
        m = jnp.max(scores, axis=-1, keepdims=True)
        p = jnp.exp(scores - m)                                   # (S1, S2) f32
        denom = jnp.sum(p, axis=-1, keepdims=True)                # (S1, 1)  f32

        ctx = jnp.dot(p.astype(bf16), v_h.astype(bf16),
                      preferred_element_type=jnp.float32)         # (S1, V) f32
        ctx = ctx * pl.reciprocal(denom, approx=True)             # EUP recip
        ctx_parts.append(ctx)

    ctx_all = jnp.concatenate(ctx_parts, axis=-1)                 # (S1, H*V) f32

    # Single output projection over all heads + bias.
    out = jnp.dot(ctx_all.astype(bf16), wo_ref[...],
                  preferred_element_type=jnp.float32)             # (S1, D1) f32
    out = out + b_ref[...].astype(jnp.float32)
    o_ref[0] = out.astype(o_ref.dtype)


def cross_attention(x1, x2, wq, wkv, wo, bo, *, num_heads, k_dim, v_dim):
    """x1: (B,S1,D1)  x2: (B,S2,D2)
       wq: (D1, H*K)  wkv: (D2, H*K + H*V)  wo: (H*V, D1)  bo: (1, D1)."""
    B, S1, D1 = x1.shape
    _, S2, D2 = x2.shape
    HK = num_heads * k_dim
    HV = num_heads * v_dim

    kernel = functools.partial(_cross_attn_kernel,
                               num_heads=num_heads, k_dim=k_dim, v_dim=v_dim)

    return pl.pallas_call(
        kernel,
        out_shape=jax.ShapeDtypeStruct((B, S1, D1), x1.dtype),
        grid_spec=pltpu.PrefetchScalarGridSpec(
            num_scalar_prefetch=0,
            grid=(B,),
            in_specs=[
                pl.BlockSpec((1, S1, D1), lambda b: (b, 0, 0)),     # x1
                pl.BlockSpec((1, S2, D2), lambda b: (b, 0, 0)),     # x2
                pl.BlockSpec((D1, HK), lambda b: (0, 0)),           # Wq (all heads)
                pl.BlockSpec((D2, HK + HV), lambda b: (0, 0)),      # [Wk|Wv] fused
                pl.BlockSpec((HV, D1), lambda b: (0, 0)),           # Wo
                pl.BlockSpec((1, D1), lambda b: (0, 0)),            # bias
            ],
            out_specs=pl.BlockSpec((1, S1, D1), lambda b: (b, 0, 0)),
        ),
        compiler_params=pltpu.CompilerParams(
            dimension_semantics=("parallel",)),
    )(x1, x2, wq, wkv, wo, bo)


def cross_attention_reference(x1, x2, wq, wk, wv, wo, bo, *, k_dim):
    # Pure-JAX f32 reference mirroring the PyTorch forward (per-head weights).
    q = jnp.einsum('bsd,hdk->bhsk', x1, wq)
    k = jnp.einsum('btd,hdk->bhtk', x2, wk)
    v = jnp.einsum('btd,hdv->bhtv', x2, wv)
    attn = jnp.einsum('bhsk,bhtk->bhst', q, k) / (k_dim ** 0.5)
    attn = jax.nn.softmax(attn, axis=-1)
    ctx = jnp.einsum('bhst,bhtv->bhsv', attn, v)
    out = jnp.einsum('bhsv,hvd->bsd', ctx, wo) + bo[0]
    return out


if __name__ == "__main__":
    # Small shapes consistent with the module's forward.
    B, S1, S2 = 2, 8, 16
    in_dim1, in_dim2 = 32, 48
    k_dim, v_dim, num_heads = 32, 32, 3

    key = jax.random.PRNGKey(0)
    k_x1, k_x2, k_q, k_k, k_v, k_o, k_b = jax.random.split(key, 7)

    x1 = jax.random.normal(k_x1, (B, S1, in_dim1), jnp.float32)
    x2 = jax.random.normal(k_x2, (B, S2, in_dim2), jnp.float32)

    # Deterministic parameter init (nn.Linear-style scaling), per-head layout.
    def init_w(kk, in_dim, out_dim, heads):
        return jax.random.uniform(kk, (heads, in_dim, out_dim), jnp.float32,
                                  minval=-1.0, maxval=1.0) / jnp.sqrt(in_dim)

    wq_h = init_w(k_q, in_dim1, k_dim, num_heads)                  # proj_q1
    wk_h = init_w(k_k, in_dim2, k_dim, num_heads)                  # proj_k2
    wv_h = init_w(k_v, in_dim2, v_dim, num_heads)                  # proj_v2
    wo_h = init_w(k_o, v_dim, in_dim1, num_heads)                  # proj_o weight
    bo = (jax.random.uniform(k_b, (1, in_dim1), jnp.float32,
                             minval=-1.0, maxval=1.0)
          / jnp.sqrt(v_dim * num_heads))                           # proj_o bias

    # f32 reference.
    ref = cross_attention_reference(x1, x2, wq_h, wk_h, wv_h, wo_h, bo,
                                    k_dim=k_dim)

    # Fuse heads into the matmul N dimension for the kernel.
    wq_f = jnp.transpose(wq_h, (1, 0, 2)).reshape(in_dim1, num_heads * k_dim)
    wk_f = jnp.transpose(wk_h, (1, 0, 2)).reshape(in_dim2, num_heads * k_dim)
    wv_f = jnp.transpose(wv_h, (1, 0, 2)).reshape(in_dim2, num_heads * v_dim)
    wkv_f = jnp.concatenate([wk_f, wv_f], axis=1)                  # (D2, H*(K+V))
    wo_f = wo_h.reshape(num_heads * v_dim, in_dim1)                # (H*V, D1)

    bf16 = jnp.bfloat16
    out = cross_attention(x1.astype(bf16), x2.astype(bf16),
                          wq_f.astype(bf16), wkv_f.astype(bf16),
                          wo_f.astype(bf16), bo.astype(bf16),
                          num_heads=num_heads, k_dim=k_dim, v_dim=v_dim)
    out = jax.block_until_ready(out)

    assert out.shape == (B, S1, in_dim1)
    # Tolerance loosened vs. the f32-only version because the kernel now feeds
    # bf16 operands to the MXU (f32 accumulation, f32 softmax).
    assert jnp.allclose(out.astype(jnp.float32), ref, atol=3e-2, rtol=3e-2), \
        "mismatch vs reference"

    print("KERNEL_OK")
</pallas_src>

<mosaic_0001>
module attributes {stable_mosaic.version = 11 : i64} {
  func.func @_cross_attn_kernel(%arg0: i32, %arg1: memref<1x8x32xbf16, #tpu.memory_space<vmem>>, %arg2: memref<1x16x48xbf16, #tpu.memory_space<vmem>>, %arg3: memref<32x96xbf16, #tpu.memory_space<vmem>>, %arg4: memref<48x192xbf16, #tpu.memory_space<vmem>>, %arg5: memref<96x32xbf16, #tpu.memory_space<vmem>>, %arg6: memref<1x32xbf16, #tpu.memory_space<vmem>>, %arg7: memref<1x8x32xbf16, #tpu.memory_space<vmem>>) attributes {dimension_semantics = [#tpu.dimension_semantics<parallel>], iteration_bounds = array<i64: 2>, scalar_prefetch = 0 : i64, scratch_operands = 0 : i64, tpu.core_type = #tpu.core_type<tc>, window_params = [{transform_indices = @transform_0, window_bounds = array<i64: 1, 8, 32>}, {transform_indices = @transform_1, window_bounds = array<i64: 1, 16, 48>}, {pipeline_mode = #tpu.pipeline_mode<synchronous>, transform_indices = @transform_2, window_bounds = array<i64: 32, 96>}, {pipeline_mode = #tpu.pipeline_mode<synchronous>, transform_indices = @transform_3, window_bounds = array<i64: 48, 192>}, {pipeline_mode = #tpu.pipeline_mode<synchronous>, transform_indices = @transform_4, window_bounds = array<i64: 96, 32>}, {pipeline_mode = #tpu.pipeline_mode<synchronous>, transform_indices = @transform_5, window_bounds = array<i64: 1, 32>}, {transform_indices = @transform_6, window_bounds = array<i64: 1, 8, 32>}]} {
    %c0 = arith.constant 0 : index
    %c0_0 = arith.constant 0 : index
    %c0_1 = arith.constant 0 : index
    %0 = vector.load %arg1[%c0, %c0_0, %c0_1] : memref<1x8x32xbf16, #tpu.memory_space<vmem>>, vector<1x8x32xbf16>
    %1 = vector.shape_cast %0 : vector<1x8x32xbf16> to vector<8x32xbf16>
    %c0_2 = arith.constant 0 : index
    %c0_3 = arith.constant 0 : index
    %c0_4 = arith.constant 0 : index
    %2 = vector.load %arg2[%c0_2, %c0_3, %c0_4] : memref<1x16x48xbf16, #tpu.memory_space<vmem>>, vector<1x16x48xbf16>
    %3 = vector.shape_cast %2 : vector<1x16x48xbf16> to vector<16x48xbf16>
    %c0_5 = arith.constant 0 : index
    %c0_6 = arith.constant 0 : index
    %4 = vector.load %arg3[%c0_5, %c0_6] : memref<32x96xbf16, #tpu.memory_space<vmem>>, vector<32x96xbf16>
    %cst = arith.constant dense<0.000000e+00> : vector<8x96xf32>
    %5 = tpu.matmul %1, %4, %cst {dimension_numbers = #tpu.dot_dimension_numbers<[1], [0], [0], [1], [0, 0, 1, 1], [], []>} : vector<8x32xbf16>, vector<32x96xbf16>, vector<8x96xf32> -> vector<8x96xf32>
    %c0_7 = arith.constant 0 : index
    %c0_8 = arith.constant 0 : index
    %6 = vector.load %arg4[%c0_7, %c0_8] : memref<48x192xbf16, #tpu.memory_space<vmem>>, vector<48x192xbf16>
    %cst_9 = arith.constant dense<0.000000e+00> : vector<16x192xf32>
    %7 = tpu.matmul %3, %6, %cst_9 {dimension_numbers = #tpu.dot_dimension_numbers<[1], [0], [0], [1], [0, 0, 1, 1], [], []>} : vector<16x48xbf16>, vector<48x192xbf16>, vector<16x192xf32> -> vector<16x192xf32>
    %8 = vector.extract_strided_slice %5 {offsets = [0, 0], sizes = [8, 32], strides = [1, 1]} : vector<8x96xf32> to vector<8x32xf32>
    %9 = vector.extract_strided_slice %7 {offsets = [0, 0], sizes = [16, 32], strides = [1, 1]} : vector<16x192xf32> to vector<16x32xf32>
    %10 = vector.extract_strided_slice %7 {offsets = [0, 96], sizes = [16, 32], strides = [1, 1]} : vector<16x192xf32> to vector<16x32xf32>
    %11 = arith.truncf %8 : vector<8x32xf32> to vector<8x32xbf16>
    %12 = arith.truncf %9 : vector<16x32xf32> to vector<16x32xbf16>
    %cst_10 = arith.constant dense<0.000000e+00> : vector<8x16xf32>
    %13 = tpu.matmul %11, %12, %cst_10 {dimension_numbers = #tpu.dot_dimension_numbers<[1], [1], [0], [0], [0, 0, 1, 0], [], []>} : vector<8x32xbf16>, vector<16x32xbf16>, vector<8x16xf32> -> vector<8x16xf32>
    %cst_11 = arith.constant 0.176776692 : f32
    %14 = vector.broadcast %cst_11 : f32 to vector<8x16xf32>
    %15 = arith.mulf %13, %14 : vector<8x16xf32>
    %cst_12 = arith.constant dense<0xFF800000> : vector<8xf32>
    %16 = vector.multi_reduction <maximumf>, %15, %cst_12 [1] : vector<8x16xf32> to vector<8xf32>
    %17 = vector.shape_cast %16 : vector<8xf32> to vector<8x1xf32>
    %18 = vector.broadcast %17 : vector<8x1xf32> to vector<8x16xf32>
    %19 = arith.subf %15, %18 : vector<8x16xf32>
    %20 = math.exp %19 : vector<8x16xf32>
    %cst_13 = arith.constant dense<0.000000e+00> : vector<8xf32>
    %21 = vector.multi_reduction <add>, %20, %cst_13 [1] : vector<8x16xf32> to vector<8xf32>
    %22 = vector.shape_cast %21 : vector<8xf32> to vector<8x1xf32>
    %23 = arith.truncf %20 : vector<8x16xf32> to vector<8x16xbf16>
    %24 = arith.truncf %10 : vector<16x32xf32> to vector<16x32xbf16>
    %cst_14 = arith.constant dense<0.000000e+00> : vector<8x32xf32>
    %25 = tpu.matmul %23, %24, %cst_14 {dimension_numbers = #tpu.dot_dimension_numbers<[1], [0], [0], [1], [0, 0, 1, 1], [], []>} : vector<8x16xbf16>, vector<16x32xbf16>, vector<8x32xf32> -> vector<8x32xf32>
    %26 = tpu.reciprocal %22 {approx = true} : vector<8x1xf32> -> vector<8x1xf32>
    %27 = vector.broadcast %26 : vector<8x1xf32> to vector<8x32xf32>
    %28 = arith.mulf %25, %27 : vector<8x32xf32>
    %29 = vector.extract_strided_slice %5 {offsets = [0, 32], sizes = [8, 32], strides = [1, 1]} : vector<8x96xf32> to vector<8x32xf32>
    %30 = vector.extract_strided_slice %7 {offsets = [0, 32], sizes = [16, 32], strides = [1, 1]} : vector<16x192xf32> to vector<16x32xf32>
    %31 = vector.extract_strided_slice %7 {offsets = [0, 128], sizes = [16, 32], strides = [1, 1]} : vector<16x192xf32> to vector<16x32xf32>
    %32 = arith.truncf %29 : vector<8x32xf32> to vector<8x32xbf16>
    %33 = arith.truncf %30 : vector<16x32xf32> to vector<16x32xbf16>
    %cst_15 = arith.constant dense<0.000000e+00> : vector<8x16xf32>
    %34 = tpu.matmul %32, %33, %cst_15 {dimension_numbers = #tpu.dot_dimension_numbers<[1], [1], [0], [0], [0, 0, 1, 0], [], []>} : vector<8x32xbf16>, vector<16x32xbf16>, vector<8x16xf32> -> vector<8x16xf32>
    %cst_16 = arith.constant 0.176776692 : f32
    %35 = vector.broadcast %cst_16 : f32 to vector<8x16xf32>
    %36 = arith.mulf %34, %35 : vector<8x16xf32>
    %cst_17 = arith.constant dense<0xFF800000> : vector<8xf32>
    %37 = vector.multi_reduction <maximumf>, %36, %cst_17 [1] : vector<8x16xf32> to vector<8xf32>
    %38 = vector.shape_cast %37 : vector<8xf32> to vector<8x1xf32>
    %39 = vector.broadcast %38 : vector<8x1xf32> to vector<8x16xf32>
    %40 = arith.subf %36, %39 : vector<8x16xf32>
    %41 = math.exp %40 : vector<8x16xf32>
    %cst_18 = arith.constant dense<0.000000e+00> : vector<8xf32>
    %42 = vector.multi_reduction <add>, %41, %cst_18 [1] : vector<8x16xf32> to vector<8xf32>
    %43 = vector.shape_cast %42 : vector<8xf32> to vector<8x1xf32>
    %44 = arith.truncf %41 : vector<8x16xf32> to vector<8x16xbf16>
    %45 = arith.truncf %31 : vector<16x32xf32> to vector<16x32xbf16>
    %cst_19 = arith.constant dense<0.000000e+00> : vector<8x32xf32>
    %46 = tpu.matmul %44, %45, %cst_19 {dimension_numbers = #tpu.dot_dimension_numbers<[1], [0], [0], [1], [0, 0, 1, 1], [], []>} : vector<8x16xbf16>, vector<16x32xbf16>, vector<8x32xf32> -> vector<8x32xf32>
    %47 = tpu.reciprocal %43 {approx = true} : vector<8x1xf32> -> vector<8x1xf32>
    %48 = vector.broadcast %47 : vector<8x1xf32> to vector<8x32xf32>
    %49 = arith.mulf %46, %48 : vector<8x32xf32>
    %50 = vector.extract_strided_slice %5 {offsets = [0, 64], sizes = [8, 32], strides = [1, 1]} : vector<8x96xf32> to vector<8x32xf32>
    %51 = vector.extract_strided_slice %7 {offsets = [0, 64], sizes = [16, 32], strides = [1, 1]} : vector<16x192xf32> to vector<16x32xf32>
    %52 = vector.extract_strided_slice %7 {offsets = [0, 160], sizes = [16, 32], strides = [1, 1]} : vector<16x192xf32> to vector<16x32xf32>
    %53 = arith.truncf %50 : vector<8x32xf32> to vector<8x32xbf16>
    %54 = arith.truncf %51 : vector<16x32xf32> to vector<16x32xbf16>
    %cst_20 = arith.constant dense<0.000000e+00> : vector<8x16xf32>
    %55 = tpu.matmul %53, %54, %cst_20 {dimension_numbers = #tpu.dot_dimension_numbers<[1], [1], [0], [0], [0, 0, 1, 0], [], []>} : vector<8x32xbf16>, vector<16x32xbf16>, vector<8x16xf32> -> vector<8x16xf32>
    %cst_21 = arith.constant 0.176776692 : f32
    %56 = vector.broadcast %cst_21 : f32 to vector<8x16xf32>
    %57 = arith.mulf %55, %56 : vector<8x16xf32>
    %cst_22 = arith.constant dense<0xFF800000> : vector<8xf32>
    %58 = vector.multi_reduction <maximumf>, %57, %cst_22 [1] : vector<8x16xf32> to vector<8xf32>
    %59 = vector.shape_cast %58 : vector<8xf32> to vector<8x1xf32>
    %60 = vector.broadcast %59 : vector<8x1xf32> to vector<8x16xf32>
    %61 = arith.subf %57, %60 : vector<8x16xf32>
    %62 = math.exp %61 : vector<8x16xf32>
    %cst_23 = arith.constant dense<0.000000e+00> : vector<8xf32>
    %63 = vector.multi_reduction <add>, %62, %cst_23 [1] : vector<8x16xf32> to vector<8xf32>
    %64 = vector.shape_cast %63 : vector<8xf32> to vector<8x1xf32>
    %65 = arith.truncf %62 : vector<8x16xf32> to vector<8x16xbf16>
    %66 = arith.truncf %52 : vector<16x32xf32> to vector<16x32xbf16>
    %cst_24 = arith.constant dense<0.000000e+00> : vector<8x32xf32>
    %67 = tpu.matmul %65, %66, %cst_24 {dimension_numbers = #tpu.dot_dimension_numbers<[1], [0], [0], [1], [0, 0, 1, 1], [], []>} : vector<8x16xbf16>, vector<16x32xbf16>, vector<8x32xf32> -> vector<8x32xf32>
    %68 = tpu.reciprocal %64 {approx = true} : vector<8x1xf32> -> vector<8x1xf32>
    %69 = vector.broadcast %68 : vector<8x1xf32> to vector<8x32xf32>
    %70 = arith.mulf %67, %69 : vector<8x32xf32>
    %71 = tpu.concatenate %28, %49, %70 in 1 : vector<8x32xf32>, vector<8x32xf32>, vector<8x32xf32> -> vector<8x96xf32>
    %72 = arith.truncf %71 : vector<8x96xf32> to vector<8x96xbf16>
    %c0_25 = arith.constant 0 : index
    %c0_26 = arith.constant 0 : index
    %73 = vector.load %arg5[%c0_25, %c0_26] : memref<96x32xbf16, #tpu.memory_space<vmem>>, vector<96x32xbf16>
    %cst_27 = arith.constant dense<0.000000e+00> : vector<8x32xf32>
    %74 = tpu.matmul %72, %73, %cst_27 {dimension_numbers = #tpu.dot_dimension_numbers<[1], [0], [0], [1], [0, 0, 1, 1], [], []>} : vector<8x96xbf16>, vector<96x32xbf16>, vector<8x32xf32> -> vector<8x32xf32>
    %c0_28 = arith.constant 0 : index
    %c0_29 = arith.constant 0 : index
    %75 = vector.load %arg6[%c0_28, %c0_29] : memref<1x32xbf16, #tpu.memory_space<vmem>>, vector<1x32xbf16>
    %76 = arith.extf %75 : vector<1x32xbf16> to vector<1x32xf32>
    %77 = vector.broadcast %76 : vector<1x32xf32> to vector<8x32xf32>
    %78 = arith.addf %74, %77 : vector<8x32xf32>
    %79 = arith.truncf %78 : vector<8x32xf32> to vector<8x32xbf16>
    %c0_30 = arith.constant 0 : index
    %c0_31 = arith.constant 0 : index
    %c0_32 = arith.constant 0 : index
    %80 = vector.load %arg7[%c0_30, %c0_31, %c0_32] : memref<1x8x32xbf16, #tpu.memory_space<vmem>>, vector<1x8x32xbf16>
    %81 = vector.shape_cast %80 : vector<1x8x32xbf16> to vector<8x32xbf16>
    %82 = vector.shape_cast %79 : vector<8x32xbf16> to vector<1x8x32xbf16>
    tpu.vector_store %arg7[%c0_30, %c0_31, %c0_32], %82 {strides = array<i32>} : memref<1x8x32xbf16, #tpu.memory_space<vmem>>, vector<1x8x32xbf16>,
    return
  }
  func.func @transform_0(%arg0: i32) -> (i32, i32, i32) {
    %c0_i32 = arith.constant 0 : i32
    %c0_i32_0 = arith.constant 0 : i32
    %c0_i32_1 = arith.constant 0 : i32
    return %arg0, %c0_i32, %c0_i32_0 : i32, i32, i32
  }
  func.func @transform_1(%arg0: i32) -> (i32, i32, i32) {
    %c0_i32 = arith.constant 0 : i32
    %c0_i32_0 = arith.constant 0 : i32
    %c0_i32_1 = arith.constant 0 : i32
    return %arg0, %c0_i32, %c0_i32_0 : i32, i32, i32
  }
  func.func @transform_2(%arg0: i32) -> (i32, i32) {
    %c0_i32 = arith.constant 0 : i32
    %c0_i32_0 = arith.constant 0 : i32
    %c0_i32_1 = arith.constant 0 : i32
    return %c0_i32, %c0_i32_0 : i32, i32
  }
  func.func @transform_3(%arg0: i32) -> (i32, i32) {
    %c0_i32 = arith.constant 0 : i32
    %c0_i32_0 = arith.constant 0 : i32
    %c0_i32_1 = arith.constant 0 : i32
    return %c0_i32, %c0_i32_0 : i32, i32
  }
  func.func @transform_4(%arg0: i32) -> (i32, i32) {
    %c0_i32 = arith.constant 0 : i32
    %c0_i32_0 = arith.constant 0 : i32
    %c0_i32_1 = arith.constant 0 : i32
    return %c0_i32, %c0_i32_0 : i32, i32
  }
  func.func @transform_5(%arg0: i32) -> (i32, i32) {
    %c0_i32 = arith.constant 0 : i32
    %c0_i32_0 = arith.constant 0 : i32
    %c0_i32_1 = arith.constant 0 : i32
    return %c0_i32, %c0_i32_0 : i32, i32
  }
  func.func @transform_6(%arg0: i32) -> (i32, i32, i32) {
    %c0_i32 = arith.constant 0 : i32
    %c0_i32_0 = arith.constant 0 : i32
    %c0_i32_1 = arith.constant 0 : i32
    return %arg0, %c0_i32, %c0_i32_0 : i32, i32, i32
  }
}

</mosaic_0001>

<llo_original>
// kernel: tpu_custom_call.1
$region0: #{tpu_custom_call.1}
  #allocation0 [shape = 'u32[]', space=smem, size = 0x4, offset = 0x4, fixed_abs, tag = 'smem constant byte address 0x4 - core index']
  #allocation1 [shape = 'u32[144,128]{1,0:T(1,128)}', space=vmem, size = 0x12000, scoped, tag = 'internal scratch']
  %s0 = inlined_call_operand.vmem [shape: bf16[2,8,32], index: 0, kind: input, shape index: {}]
  %s1 = inlined_call_operand.vmem [shape: bf16[2,16,48], index: 1, kind: input, shape index: {}]
  %s2 = inlined_call_operand.hbm [shape: bf16[32,96], index: 2, kind: input, shape index: {}]
  %s3 = inlined_call_operand.vmem [shape: bf16[48,192], index: 3, kind: input, shape index: {}]
  %s4 = inlined_call_operand.vmem [shape: bf16[96,32], index: 4, kind: input, shape index: {}]
  %s5 = inlined_call_operand.vmem [shape: bf16[1,32], index: 5, kind: input, shape index: {}]
  %s6 = inlined_call_operand.hbm [shape: bf16[2,8,32], index: 6, kind: output, shape index: {}]
  %s7 = sld [smem:[#allocation0]]
  $region61: #{tpu_custom_call.1} parent=0
    _
  %s9 = ssub.s32 1, %s7
  %s10 = scalar_select 0, %s9, %s7
  $region1: #{tpu_custom_call.1} parent=0
    #allocation2 [shape = 'u8[8192]{0}', space=vmem, size = 0x2000, scoped, tag = 'input window, operand 2, single buffered']
    #allocation3 [shape = 's32[2]{0}', space=sflag, size = 0x8, scoped, tag = 'scoped memory for tpu_custom_call.1']
    #allocation4 [shape = 's32[2]{0}', space=sflag, size = 0x8, scoped, tag = 'scoped memory for tpu_custom_call.1']
    #allocation5 [shape = 'u8[4096]{0}', space=vmem, size = 0x1000, scoped, tag = 'output window, operand 0']
    %11 = vsyncpa [#allocation3], 0
    %12 = vsyncpa [#allocation4], 0
    %s13 = scalar_lea.sflag [#allocation4], 1
    %14 = vsyncpa %s13, 0
    loop: start=0, step=1, limit=4
    $region2: #{tpu_custom_call.1} parent=1 // loop_pre_header
      _
    $region3: #{tpu_custom_call.1} parent=1 // loop_header
      %s16 = sphi 0, %s20
      %p17 = scmp.ge.s32.totalorder %s16, 4
      %s26 = sphi 0, %s28
      %s29 = sphi 0, %s26
      %s30 = sphi 0, %s29
      %s46 = sphi 0, %s30
      %s52 = sphi 0, %s54
      %s55 = sphi 0, %s52
      %s56 = sphi 0, %s55
      %s72 = sphi 0, %s56
      %s76 = sphi 0, %s76
      %s78 = sphi 0, %s76
      %s79 = sphi 0, %s78
      %s93 = sphi 0, %s79
      %s97 = sphi 0, %s97
      %s99 = sphi 0, %s97
      %s100 = sphi 0, %s99
      %s114 = sphi 0, %s100
      %s118 = sphi 0, %s118
      %s120 = sphi 0, %s118
      %s121 = sphi 0, %s120
      %s135 = sphi 0, %s121
      %s139 = sphi 0, %s139
      %s141 = sphi 0, %s139
      %s142 = sphi 0, %s141
      %s156 = sphi 0, %s142
      %s162 = sphi 0, %s164
      %s165 = sphi 0, %s162
      %s166 = sphi 0, %s165
      %s182 = sphi 0, %s166
    $region4: #{tpu_custom_call.1} parent=1 // loop_header_branch
      %19 = sbr.rel (%p17) target = $region8
    $region5: #{tpu_custom_call.1} parent=1 // loop_body
      %s21 = ssub.s32 %s16, 1
      %s22 = ssub.s32 %s16, 2
      %s23 = sadd.s32 %s16, 1
      %s24 = ssub.s32 %s16, %s23
      %p25 = scmp.eq.s32.totalorder %s24, 0
      %s27 = sadd.s32 %s26, 1
      %s28 = scalar_select %p25, %s26, %s27
      %p31 = pneg %p25
      %p32 = scmp.eq.s32.totalorder %s16, 1
      %p33 = por %p31, %p32
      %p34 = scmp.ne.s32.totalorder %s26, %s29
      %p35 = scmp.eq.s32.totalorder %s16, 0
      %p36 = por %p34, %p35
      %p37 = scmp.ne.s32.totalorder %s26, %s29
      %p38 = scmp.eq.s32.totalorder %s21, 1
      %p39 = por %p37, %p38
      %p40 = scmp.ne.s32.totalorder %s29, %s30
      %p41 = scmp.eq.s32.totalorder %s21, 0
      %p42 = por %p40, %p41
      %p43 = scmp.ne.s32.totalorder %s29, %s30
      %p44 = scmp.eq.s32.totalorder %s22, 1
      %p45 = por %p43, %p44
      %p47 = scmp.ne.s32.totalorder %s30, %s46
      %p48 = scmp.eq.s32.totalorder %s22, 0
      %p49 = por %p47, %p48
      %s50 = ssub.s32 %s16, %s23
      %p51 = scmp.eq.s32.totalorder %s50, 0
      %s53 = sadd.s32 %s52, 1
      %s54 = scalar_select %p51, %s52, %s53
      %p57 = pneg %p51
      %p58 = scmp.eq.s32.totalorder %s16, 1
      %p59 = por %p57, %p58
      %p60 = scmp.ne.s32.totalorder %s52, %s55
      %p61 = scmp.eq.s32.totalorder %s16, 0
      %p62 = por %p60, %p61
      %p63 = scmp.ne.s32.totalorder %s52, %s55
      %p64 = scmp.eq.s32.totalorder %s21, 1
      %p65 = por %p63, %p64
      %p66 = scmp.ne.s32.totalorder %s55, %s56
      %p67 = scmp.eq.s32.totalorder %s21, 0
      %p68 = por %p66, %p67
      %p69 = scmp.ne.s32.totalorder %s55, %s56
      %p70 = scmp.eq.s32.totalorder %s22, 1
      %p71 = por %p69, %p70
      %p73 = scmp.ne.s32.totalorder %s56, %s72
      %p74 = scmp.eq.s32.totalorder %s22, 0
      %p75 = por %p73, %p74
      %s77 = sadd.s32 %s76, 1
      %p80 = scmp.eq.s32.totalorder %s16, 1
      %p81 = scmp.ne.s32.totalorder %s76, %s78
      %p82 = scmp.eq.s32.totalorder %s16, 0
      %p83 = por %p81, %p82
      %p84 = scmp.ne.s32.totalorder %s76, %s78
      %p85 = scmp.eq.s32.totalorder %s21, 1
      %p86 = por %p84, %p85
      %p87 = scmp.ne.s32.totalorder %s78, %s79
      %p88 = scmp.eq.s32.totalorder %s21, 0
      %p89 = por %p87, %p88
      %p90 = scmp.ne.s32.totalorder %s78, %s79
      %p91 = scmp.eq.s32.totalorder %s22, 1
      %p92 = por %p90, %p91
      %p94 = scmp.ne.s32.totalorder %s79, %s93
      %p95 = scmp.eq.s32.totalorder %s22, 0
      %p96 = por %p94, %p95
      %s98 = sadd.s32 %s97, 1
      %p101 = scmp.eq.s32.totalorder %s16, 1
      %p102 = scmp.ne.s32.totalorder %s97, %s99
      %p103 = scmp.eq.s32.totalorder %s16, 0
      %p104 = por %p102, %p103
      %p105 = scmp.ne.s32.totalorder %s97, %s99
      %p106 = scmp.eq.s32.totalorder %s21, 1
      %p107 = por %p105, %p106
      %p108 = scmp.ne.s32.totalorder %s99, %s100
      %p109 = scmp.eq.s32.totalorder %s21, 0
      %p110 = por %p108, %p109
      %p111 = scmp.ne.s32.totalorder %s99, %s100
      %p112 = scmp.eq.s32.totalorder %s22, 1
      %p113 = por %p111, %p112
      %p115 = scmp.ne.s32.totalorder %s100, %s114
      %p116 = scmp.eq.s32.totalorder %s22, 0
      %p117 = por %p115, %p116
      %s119 = sadd.s32 %s118, 1
      %p122 = scmp.eq.s32.totalorder %s16, 1
      %p123 = scmp.ne.s32.totalorder %s118, %s120
      %p124 = scmp.eq.s32.totalorder %s16, 0
      %p125 = por %p123, %p124
      %p126 = scmp.ne.s32.totalorder %s118, %s120
      %p127 = scmp.eq.s32.totalorder %s21, 1
      %p128 = por %p126, %p127
      %p129 = scmp.ne.s32.totalorder %s120, %s121
      %p130 = scmp.eq.s32.totalorder %s21, 0
      %p131 = por %p129, %p130
      %p132 = scmp.ne.s32.totalorder %s120, %s121
      %p133 = scmp.eq.s32.totalorder %s22, 1
      %p134 = por %p132, %p133
      %p136 = scmp.ne.s32.totalorder %s121, %s135
      %p137 = scmp.eq.s32.totalorder %s22, 0
      %p138 = por %p136, %p137
      %s140 = sadd.s32 %s139, 1
      %p143 = scmp.eq.s32.totalorder %s16, 1
      %p144 = scmp.ne.s32.totalorder %s139, %s141
      %p145 = scmp.eq.s32.totalorder %s16, 0
      %p146 = por %p144, %p145
      %p147 = scmp.ne.s32.totalorder %s139, %s141
      %p148 = scmp.eq.s32.totalorder %s21, 1
      %p149 = por %p147, %p148
      %p150 = scmp.ne.s32.totalorder %s141, %s142
      %p151 = scmp.eq.s32.totalorder %s21, 0
      %p152 = por %p150, %p151
      %p153 = scmp.ne.s32.totalorder %s141, %s142
      %p154 = scmp.eq.s32.totalorder %s22, 1
      %p155 = por %p153, %p154
      %p157 = scmp.ne.s32.totalorder %s142, %s156
      %p158 = scmp.eq.s32.totalorder %s22, 0
      %p159 = por %p157, %p158
      %s160 = ssub.s32 %s16, %s23
      %p161 = scmp.eq.s32.totalorder %s160, 0
      %s163 = sadd.s32 %s162, 1
      %s164 = scalar_select %p161, %s162, %s163
      %p167 = pneg %p161
      %p168 = scmp.eq.s32.totalorder %s16, 1
      %p169 = por %p167, %p168
      %p170 = scmp.ne.s32.totalorder %s162, %s165
      %p171 = scmp.eq.s32.totalorder %s16, 0
      %p172 = por %p170, %p171
      %p173 = scmp.ne.s32.totalorder %s162, %s165
      %p174 = scmp.eq.s32.totalorder %s21, 1
      %p175 = por %p173, %p174
      %p176 = scmp.ne.s32.totalorder %s165, %s166
      %p177 = scmp.eq.s32.totalorder %s21, 0
      %p178 = por %p176, %p177
      %p179 = scmp.ne.s32.totalorder %s165, %s166
      %p180 = scmp.eq.s32.totalorder %s22, 1
      %p181 = por %p179, %p180
      %p183 = scmp.ne.s32.totalorder %s166, %s182
      %p184 = scmp.eq.s32.totalorder %s22, 0
      %p185 = por %p183, %p184
      %p186 = scmp.le.s32.totalorder 1, %s16
      %p187 = scmp.lt.s32.totalorder %s16, 3
      %p188 = pnand %p186, %p187
      %p189 = pneg %p188
      // Predicated region
      $region9: #{tpu_custom_call.1} parent=5 // pred_check
        _
      $region10: #{tpu_custom_call.1} parent=5 // pred_check_branch
        %191 = sbr.rel (%p188) target = $region12
      $region11: #{tpu_custom_call.1} parent=5 // pred_region
        %s192 = ssub.s32 %s16, 1
        // Predicated region
        $region13: #{tpu_custom_call.1} parent=11 // pred_check
          %p193 = pneg %p89
        $region14: #{tpu_custom_call.1} parent=11 // pred_check_branch
          %195 = sbr.rel (%p193) target = $region16
        $region15: #{tpu_custom_call.1} parent=11 // pred_region
          %s197 = ssub.s32 256, 256
          %198 = vsyncadd [#allocation3], %s197
          %s199 = sshll.u32 [#allocation2], 4
          %s200 = int_to_ptr.vmem [resolvable:$true] %s199
          %205 = dma.hbm_to_vmem [thread:$0]  %s2, 256, %s200, [#allocation3], 64, 64, 4
        $region16: #{tpu_custom_call.1} parent=11 // pred_fallthru
          _
        // Predicated region
        $region17: #{tpu_custom_call.1} parent=11 // pred_check
          %p206 = pneg %p110
        $region18: #{tpu_custom_call.1} parent=11 // pred_check_branch
          %208 = sbr.rel (%p206) target = $region20
        $region19: #{tpu_custom_call.1} parent=11 // pred_region
          _
        $region20: #{tpu_custom_call.1} parent=11 // pred_fallthru
          _
        // Predicated region
        $region21: #{tpu_custom_call.1} parent=11 // pred_check
          %p209 = pneg %p131
        $region22: #{tpu_custom_call.1} parent=11 // pred_check_branch
          %211 = sbr.rel (%p209) target = $region24
        $region23: #{tpu_custom_call.1} parent=11 // pred_region
          _
        $region24: #{tpu_custom_call.1} parent=11 // pred_fallthru
          _
        // Predicated region
        $region25: #{tpu_custom_call.1} parent=11 // pred_check
          %p212 = pneg %p152
        $region26: #{tpu_custom_call.1} parent=11 // pred_check_branch
          %214 = sbr.rel (%p212) target = $region28
        $region27: #{tpu_custom_call.1} parent=11 // pred_region
          _
        $region28: #{tpu_custom_call.1} parent=11 // pred_fallthru
          _
      $region12: #{tpu_custom_call.1} parent=5 // pred_fallthru
        _
      %p215 = scmp.lt.s32.totalorder %s16, 2
      // Predicated region
      $region29: #{tpu_custom_call.1} parent=5 // pred_check
        %p216 = pneg %p215
      $region30: #{tpu_custom_call.1} parent=5 // pred_check_branch
        %218 = sbr.rel (%p216) target = $region32
      $region31: #{tpu_custom_call.1} parent=5 // pred_region
        // Predicated region
        $region33: #{tpu_custom_call.1} parent=31 // pred_check
          %p219 = pneg %p36
        $region34: #{tpu_custom_call.1} parent=31 // pred_check_branch
          %221 = sbr.rel (%p219) target = $region36
        $region35: #{tpu_custom_call.1} parent=31 // pred_region
          %p222 = scmp.lt.s32.totalorder %s16, 1
          %s223 = scalar_select %p222, %s16, 1
          %s224 = smul.addr %s223, 4
          %s225 = scalar_lea.vmem %s0, %s224
        $region36: #{tpu_custom_call.1} parent=31 // pred_fallthru
          _
        // Predicated region
        $region37: #{tpu_custom_call.1} parent=31 // pred_check
          %p226 = pneg %p62
        $region38: #{tpu_custom_call.1} parent=31 // pred_check_branch
          %228 = sbr.rel (%p226) target = $region40
        $region39: #{tpu_custom_call.1} parent=31 // pred_region
          %p229 = scmp.lt.s32.totalorder %s16, 1
          %s230 = scalar_select %p229, %s16, 1
          %s231 = smul.addr %s230, 2
          %s232 = smul.addr %s231, 4
          %s233 = scalar_lea.vmem %s1, %s232
        $region40: #{tpu_custom_call.1} parent=31 // pred_fallthru
          _
      $region32: #{tpu_custom_call.1} parent=5 // pred_fallthru
        _
      %p234 = scmp.le.s32.totalorder 1, %s16
      %p235 = scmp.lt.s32.totalorder %s16, 3
      %p236 = pnand %p234, %p235
      %p237 = pneg %p236
      // Predicated region
      $region41: #{tpu_custom_call.1} parent=5 // pred_check
        _
      $region42: #{tpu_custom_call.1} parent=5 // pred_check_branch
        %239 = sbr.rel (%p236) target = $region44
      $region43: #{tpu_custom_call.1} parent=5 // pred_region
        %s240 = ssub.s32 %s16, 1
        // Predicated region
        $region45: #{tpu_custom_call.1} parent=43 // pred_check
          %p241 = pneg %p89
        $region46: #{tpu_custom_call.1} parent=43 // pred_check_branch
          %243 = sbr.rel (%p241) target = $region48
        $region47: #{tpu_custom_call.1} parent=43 // pred_region
          %244 = dma.done [#allocation3], 256
        $region48: #{tpu_custom_call.1} parent=43 // pred_fallthru
          _
        %p245 = scmp.lt.s32.totalorder %s21, 1
        %s246 = scalar_select %p245, %s21, 1
        %s247 = smul.addr %s246, 4
        %s248 = scalar_lea.vmem %s0, %s247
        %p249 = pneg %p42
        %p250 = pneg %p39
        %p251 = scmp.lt.s32.totalorder %s21, 1
        %s252 = scalar_select %p251, %s21, 1
        %s253 = smul.addr %s252, 2
        %s254 = smul.addr %s253, 4
        %s255 = scalar_lea.vmem %s1, %s254
        %p256 = pneg %p68
        %p257 = pneg %p65
        %p258 = pneg %p89
        %p259 = pneg %p86
        %p260 = pneg %p110
        %p261 = pneg %p107
        %p262 = pneg %p131
        %p263 = pneg %p128
        %p264 = pneg %p152
        %p265 = pneg %p149
        %p266 = pneg %p178
        %p267 = pneg %p175
        %s268 = sand.u32 %s165, 1
        %s269 = scalar_lea.sflag [#allocation4], %s268
        %s270 = sand.u32 %s165, 1
        %s271 = smul.addr %s270, 4
        %s272 = scalar_lea.vmem [#allocation5], %s271
        %p273 = scmp.lt.s32.totalorder %s21, 1
        %s274 = scalar_select %p273, %s21, 1
        %s275 = smul.addr %s274, 4
        %s276 = scalar_lea.vmem %s0, %s275
        %p277 = scmp.lt.s32.totalorder %s21, 1
        %s278 = scalar_select %p277, %s21, 1
        %s279 = smul.addr %s278, 2
        %s280 = smul.addr %s279, 4
        %s281 = scalar_lea.vmem %s1, %s280
        %v283 = vld [vmem:[%s276] sm:$0xf]
        %v284 = vld [vmem:[%s281] sm:$0xf]
        %v285 = vld [vmem:[%s281 + $0x4] sm:$0xf]
        %v286 = vld [vmem:[#allocation2] sm:$0xf]
        %v287 = vld [vmem:[#allocation2 + $0x4] sm:$0xf]
        %v288 = vld [vmem:[#allocation2 + $0x8] sm:$0xf]
        %v289 = vld [vmem:[#allocation2 + $0xc] sm:$0xf]
        %v294 = vunpack.c.l.b16 %v286
        %v295 = vunpack.c.l.b16 %v287
        %v296 = vunpack.c.l.b16 %v288
        %v297 = vunpack.c.l.b16 %v289
        %v298 = vpack.c.b16 %v295, %v294
        %v299 = vpack.c.b16 %v297, %v296
        %vm302 = vcmask 261120
        %v304 = vsel %vm302, %v283, 0
        %306 = vmatprep.subr.bf16.mxu0 0
        %307 = vmatpush1.bf16.msra.mxu0 %v298
        %308 = vmatprep.subr.bf16.mxu0 0
        %309 = vmatpush1.bf16.msra.mxu0 %v299
        %310 = vmatprep.subr.bf16.mxu0 0
        %311 = vmatpush1.bf16.msra.mxu0 0
        %312 = vmatprep.subr.bf16.mxu0 0
        %313 = vmatpush1.bf16.msra.mxu0 0
        %314 = vmatprep.subr.bf16.mxu0 0
        %315 = vmatpush1.bf16.msra.mxu0 0
        %316 = vmatprep.subr.bf16.mxu0 0
        %317 = vmatpush1.bf16.msra.mxu0 0
        %318 = vmatprep.subr.bf16.mxu0 0
        %319 = vmatpush1.bf16.msra.mxu0 0
        %320 = vmatprep.subr.bf16.mxu0 0
        %321 = vmatpush1.bf16.msra.mxu0 0
        %322 = vmatprep.subr.bf16.mxu0 0
        %323 = vmatpush1.bf16.msra.mxu0 0
        %324 = vmatprep.subr.bf16.mxu0 0
        %325 = vmatpush1.bf16.msra.mxu0 0
        %326 = vmatprep.subr.bf16.mxu0 0
        %327 = vmatpush1.bf16.msra.mxu0 0
        %328 = vmatprep.subr.bf16.mxu0 0
        %329 = vmatpush1.bf16.msra.mxu0 0
        %330 = vmatprep.subr.bf16.mxu0 0
        %331 = vmatpush1.bf16.msra.mxu0 0
        %332 = vmatprep.subr.bf16.mxu0 0
        %333 = vmatpush1.bf16.msra.mxu0 0
        %334 = vmatprep.subr.bf16.mxu0 0
        %335 = vmatpush1.bf16.msra.mxu0 0
        %336 = vmatprep.subr.bf16.mxu0 0
        %337 = vmatpush1.bf16.msra.mxu0 0
        %338 = vmatprep.mubr.bf16.mxu0 0
        %339 = vmatmul.mubr.bf16.gmra.mrb[0].mxu0 %v304
        %v340 = vpop.f32.mrb[0].mxu0
        %v341 = vadd.f32 0.0, %v340
        %v342 = vpop.f32.mrb[0].mxu0
        %v343 = vpop.f32.mrb[0].mxu0
        %v344 = vpop.f32.mrb[0].mxu0
        %345 = vdwg.mxu0
        %v346 = vld [vmem:[%s3] sm:$0xff]
        %v347 = vld [vmem:[%s3 + $0x8] sm:$0xff]
        %v348 = vld [vmem:[%s3 + $0x10] sm:$0xff]
        %v349 = vld [vmem:[%s3 + $0x18] sm:$0xff]
        %v350 = vld [vmem:[%s3 + $0x20] sm:$0xff]
        %v351 = vld [vmem:[%s3 + $0x28] sm:$0xff]
        %v354 = vunpack.c.l.b16 %v284
        %v355 = vunpack.c.l.b16 %v285
        %v356 = vpack.c.b16 %v355, %v354
        %v363 = vunpack.c.l.b16 %v346
        %v364 = vunpack.c.h.b16 %v346
        %v365 = vunpack.c.l.b16 %v347
        %v366 = vunpack.c.h.b16 %v347
        %v367 = vunpack.c.l.b16 %v348
        %v368 = vunpack.c.h.b16 %v348
        %v369 = vunpack.c.l.b16 %v349
        %v370 = vunpack.c.h.b16 %v349
        %v371 = vunpack.c.l.b16 %v350
        %v372 = vunpack.c.h.b16 %v350
        %v373 = vunpack.c.l.b16 %v351
        %v374 = vunpack.c.h.b16 %v351
        %v375 = vpack.c.b16 %v365, %v363
        %v376 = vpack.c.b16 %v366, %v364
        %v377 = vpack.c.b16 %v369, %v367
        %v378 = vpack.c.b16 %v370, %v368
        %v379 = vpack.c.b16 %v373, %v371
        %v380 = vpack.c.b16 %v374, %v372
        %vm387 = vcmask 392192
        %v389 = vsel %vm387, %v356, 0
        %391 = vmatprep.subr.bf16.mxu0 %v376
        %392 = vmatpush1.bf16.msra.mxu0 %v375
        %393 = vmatprep.subr.bf16.mxu0 %v378
        %394 = vmatpush1.bf16.msra.mxu0 %v377
        %395 = vmatprep.subr.bf16.mxu0 %v380
        %396 = vmatpush1.bf16.msra.mxu0 %v379
        %397 = vmatprep.subr.bf16.mxu0 0
        %398 = vmatpush1.bf16.msra.mxu0 0
        %399 = vmatprep.subr.bf16.mxu0 0
        %400 = vmatpush1.bf16.msra.mxu0 0
        %401 = vmatprep.subr.bf16.mxu0 0
        %402 = vmatpush1.bf16.msra.mxu0 0
        %403 = vmatprep.subr.bf16.mxu0 0
        %404 = vmatpush1.bf16.msra.mxu0 0
        %405 = vmatprep.subr.bf16.mxu0 0
        %406 = vmatpush1.bf16.msra.mxu0 0
        %407 = vmatprep.subr.bf16.mxu0 0
        %408 = vmatpush1.bf16.msra.mxu0 0
        %409 = vmatprep.subr.bf16.mxu0 0
        %410 = vmatpush1.bf16.msra.mxu0 0
        %411 = vmatprep.subr.bf16.mxu0 0
        %412 = vmatpush1.bf16.msra.mxu0 0
        %413 = vmatprep.subr.bf16.mxu0 0
        %414 = vmatpush1.bf16.msra.mxu0 0
        %415 = vmatprep.subr.bf16.mxu0 0
        %416 = vmatpush1.bf16.msra.mxu0 0
        %417 = vmatprep.subr.bf16.mxu0 0
        %418 = vmatpush1.bf16.msra.mxu0 0
        %419 = vmatprep.subr.bf16.mxu0 0
        %420 = vmatpush1.bf16.msra.mxu0 0
        %421 = vmatprep.subr.bf16.mxu0 0
        %422 = vmatpush1.bf16.msra.mxu0 0
        %423 = vmatprep.mubr.bf16.mxu0 0
        %424 = vmatmul.mubr.bf16.gmra.mrb[0].mxu0 %v389
        %v425 = vpop.f32.mrb[0].mxu0
        %v426 = vadd.f32 0.0, %v425
        %v427 = vpop.f32.mrb[0].mxu0
        %v428 = vadd.f32 0.0, %v427
        %v429 = vpop.f32.mrb[0].mxu0
        %v430 = vadd.f32 0.0, %v429
        %v431 = vpop.f32.mrb[0].mxu0
        %v432 = vadd.f32 0.0, %v431
        %433 = vdwg.mxu0
        %v434 = vpack.c.bf16 %v341, %v341
        %v435 = vpack.c.bf16 %v430, %v426
        %v437 = vsel %vm302, %v434, 0
        %v440 = vsel %vm302, %v435, 0
        %442 = vmatprep.subr.bf16.mxu0 0
        %443 = vmatpush1.bf16.xpose.msra.mxu0 %v440
        %444 = vmatprep.subr.bf16.mxu0 0
        %445 = vmatpush1.bf16.xpose.msra.mxu0 0
        %446 = vmatprep.subr.bf16.mxu0 0
        %447 = vmatpush1.bf16.xpose.msra.mxu0 0
        %448 = vmatprep.subr.bf16.mxu0 0
        %449 = vmatpush1.bf16.xpose.msra.mxu0 0
        %450 = vmatprep.subr.bf16.mxu0 0
        %451 = vmatpush1.bf16.xpose.msra.mxu0 0
        %452 = vmatprep.subr.bf16.mxu0 0
        %453 = vmatpush1.bf16.xpose.msra.mxu0 0
        %454 = vmatprep.subr.bf16.mxu0 0
        %455 = vmatpush1.bf16.xpose.msra.mxu0 0
        %456 = vmatprep.subr.bf16.mxu0 0
        %457 = vmatpush1.bf16.xpose.msra.mxu0 0
        %458 = vmatprep.subr.bf16.mxu0 0
        %459 = vmatpush1.bf16.xpose.msra.mxu0 0
        %460 = vmatprep.subr.bf16.mxu0 0
        %461 = vmatpush1.bf16.xpose.msra.mxu0 0
        %462 = vmatprep.subr.bf16.mxu0 0
        %463 = vmatpush1.bf16.xpose.msra.mxu0 0
        %464 = vmatprep.subr.bf16.mxu0 0
        %465 = vmatpush1.bf16.xpose.msra.mxu0 0
        %466 = vmatprep.subr.bf16.mxu0 0
        %467 = vmatpush1.bf16.xpose.msra.mxu0 0
        %468 = vmatprep.subr.bf16.mxu0 0
        %469 = vmatpush1.bf16.xpose.msra.mxu0 0
        %470 = vmatprep.subr.bf16.mxu0 0
        %471 = vmatpush1.bf16.xpose.msra.mxu0 0
        %472 = vmatprep.subr.bf16.mxu0 0
        %473 = vmatpush1.bf16.xpose.msra.mxu0 0
        %474 = vmatprep.mubr.bf16.mxu0 0
        %475 = vmatmul.mubr.bf16.gmra.mrb[0].mxu0 %v437
        %v476 = vpop.f32.mrb[0].mxu0
        %v477 = vadd.f32 0.0, %v476
        %v478 = vpop.f32.mrb[0].mxu0
        %v479 = vpop.f32.mrb[0].mxu0
        %v480 = vpop.f32.mrb[0].mxu0
        %481 = vdwg.mxu0
        %v482 = vmul.f32 %v477, 0.17677669
        %vm483 = vcmask 130048
        %v484 = vsel %vm483, %v482, -inf
        %485 = vmax.xlane.f32.xlu0 %v484
        %v486 = vpop.xlane.xlu0 %485
        %v487 = vsub.f32 %v482, %v486
        %v488 = vmul.f32 %v487, 1.442695
        %v489 = vpow.pop %v488
        %v490 = vsel %vm483, %v489, 0.0
        %491 = vadd.xlane.f32.xlu0 %v490
        %v492 = vpop.xlane.xlu0 %491
        %v493 = vpack.c.bf16 %v489, %v489
        %495 = vrot.lane.b32.xlu0 %v435, 32
        %v496 = vpop.permute.xlu0 %495
        %v499 = vsel %vm483, %v493, 0
        %501 = vmatprep.subr.bf16.mxu0 0
        %502 = vmatpush1.bf16.msra.mxu0 %v496
        %503 = vmatprep.subr.bf16.mxu0 0
        %504 = vmatpush1.bf16.msra.mxu0 0
        %505 = vmatprep.subr.bf16.mxu0 0
        %506 = vmatpush1.bf16.msra.mxu0 0
        %507 = vmatprep.subr.bf16.mxu0 0
        %508 = vmatpush1.bf16.msra.mxu0 0
        %509 = vmatprep.subr.bf16.mxu0 0
        %510 = vmatpush1.bf16.msra.mxu0 0
        %511 = vmatprep.subr.bf16.mxu0 0
        %512 = vmatpush1.bf16.msra.mxu0 0
        %513 = vmatprep.subr.bf16.mxu0 0
        %514 = vmatpush1.bf16.msra.mxu0 0
        %515 = vmatprep.subr.bf16.mxu0 0
        %516 = vmatpush1.bf16.msra.mxu0 0
        %517 = vmatprep.subr.bf16.mxu0 0
        %518 = vmatpush1.bf16.msra.mxu0 0
        %519 = vmatprep.subr.bf16.mxu0 0
        %520 = vmatpush1.bf16.msra.mxu0 0
        %521 = vmatprep.subr.bf16.mxu0 0
        %522 = vmatpush1.bf16.msra.mxu0 0
        %523 = vmatprep.subr.bf16.mxu0 0
        %524 = vmatpush1.bf16.msra.mxu0 0
        %525 = vmatprep.subr.bf16.mxu0 0
        %526 = vmatpush1.bf16.msra.mxu0 0
        %527 = vmatprep.subr.bf16.mxu0 0
        %528 = vmatpush1.bf16.msra.mxu0 0
        %529 = vmatprep.subr.bf16.mxu0 0
        %530 = vmatpush1.bf16.msra.mxu0 0
        %531 = vmatprep.subr.bf16.mxu0 0
        %532 = vmatpush1.bf16.msra.mxu0 0
        %533 = vmatprep.mubr.bf16.mxu0 0
        %534 = vmatmul.mubr.bf16.gmra.mrb[0].mxu0 %v499
        %v535 = vpop.f32.mrb[0].mxu0
        %v536 = vadd.f32 0.0, %v535
        %v537 = vpop.f32.mrb[0].mxu0
        %v538 = vpop.f32.mrb[0].mxu0
        %v539 = vpop.f32.mrb[0].mxu0
        %540 = vdwg.mxu0
        %v541 = vrcp.pop %v492
        %v542 = vmul.f32 %v536, %v541
        %544 = vrot.lane.b32.xlu0 %v434, 96
        %v545 = vpop.permute.xlu0 %544
        %546 = vrot.lane.b32.xlu0 %v435, 96
        %v547 = vpop.permute.xlu0 %546
        %v549 = vsel %vm302, %v545, 0
        %v552 = vsel %vm302, %v547, 0
        %554 = vmatprep.subr.bf16.mxu0 0
        %555 = vmatpush1.bf16.xpose.msra.mxu0 %v552
        %556 = vmatprep.subr.bf16.mxu0 0
        %557 = vmatpush1.bf16.xpose.msra.mxu0 0
        %558 = vmatprep.subr.bf16.mxu0 0
        %559 = vmatpush1.bf16.xpose.msra.mxu0 0
        %560 = vmatprep.subr.bf16.mxu0 0
        %561 = vmatpush1.bf16.xpose.msra.mxu0 0
        %562 = vmatprep.subr.bf16.mxu0 0
        %563 = vmatpush1.bf16.xpose.msra.mxu0 0
        %564 = vmatprep.subr.bf16.mxu0 0
        %565 = vmatpush1.bf16.xpose.msra.mxu0 0
        %566 = vmatprep.subr.bf16.mxu0 0
        %567 = vmatpush1.bf16.xpose.msra.mxu0 0
        %568 = vmatprep.subr.bf16.mxu0 0
        %569 = vmatpush1.bf16.xpose.msra.mxu0 0
        %570 = vmatprep.subr.bf16.mxu0 0
        %571 = vmatpush1.bf16.xpose.msra.mxu0 0
        %572 = vmatprep.subr.bf16.mxu0 0
        %573 = vmatpush1.bf16.xpose.msra.mxu0 0
        %574 = vmatprep.subr.bf16.mxu0 0
        %575 = vmatpush1.bf16.xpose.msra.mxu0 0
        %576 = vmatprep.subr.bf16.mxu0 0
        %577 = vmatpush1.bf16.xpose.msra.mxu0 0
        %578 = vmatprep.subr.bf16.mxu0 0
        %579 = vmatpush1.bf16.xpose.msra.mxu0 0
        %580 = vmatprep.subr.bf16.mxu0 0
        %581 = vmatpush1.bf16.xpose.msra.mxu0 0
        %582 = vmatprep.subr.bf16.mxu0 0
        %583 = vmatpush1.bf16.xpose.msra.mxu0 0
        %584 = vmatprep.subr.bf16.mxu0 0
        %585 = vmatpush1.bf16.xpose.msra.mxu0 0
        %586 = vmatprep.mubr.bf16.mxu0 0
        %587 = vmatmul.mubr.bf16.gmra.mrb[0].mxu0 %v549
        %v588 = vpop.f32.mrb[0].mxu0
        %v589 = vadd.f32 0.0, %v588
        %v590 = vpop.f32.mrb[0].mxu0
        %v591 = vpop.f32.mrb[0].mxu0
        %v592 = vpop.f32.mrb[0].mxu0
        %593 = vdwg.mxu0
        %v594 = vmul.f32 %v589, 0.17677669
        %v595 = vsel %vm483, %v594, -inf
        %596 = vmax.xlane.f32.xlu0 %v595
        %v597 = vpop.xlane.xlu0 %596
        %v598 = vsub.f32 %v594, %v597
        %v599 = vmul.f32 %v598, 1.442695
        %v600 = vpow.pop %v599
        %v601 = vsel %vm483, %v600, 0.0
        %602 = vadd.xlane.f32.xlu0 %v601
        %v603 = vpop.xlane.xlu0 %602
        %v604 = vpack.c.bf16 %v600, %v600
        %v605 = vpack.c.bf16 %v432, %v428
        %v607 = vsel %vm483, %v604, 0
        %609 = vmatprep.subr.bf16.mxu0 0
        %610 = vmatpush1.bf16.msra.mxu0 %v605
        %611 = vmatprep.subr.bf16.mxu0 0
        %612 = vmatpush1.bf16.msra.mxu0 0
        %613 = vmatprep.subr.bf16.mxu0 0
        %614 = vmatpush1.bf16.msra.mxu0 0
        %615 = vmatprep.subr.bf16.mxu0 0
        %616 = vmatpush1.bf16.msra.mxu0 0
        %617 = vmatprep.subr.bf16.mxu0 0
        %618 = vmatpush1.bf16.msra.mxu0 0
        %619 = vmatprep.subr.bf16.mxu0 0
        %620 = vmatpush1.bf16.msra.mxu0 0
        %621 = vmatprep.subr.bf16.mxu0 0
        %622 = vmatpush1.bf16.msra.mxu0 0
        %623 = vmatprep.subr.bf16.mxu0 0
        %624 = vmatpush1.bf16.msra.mxu0 0
        %625 = vmatprep.subr.bf16.mxu0 0
        %626 = vmatpush1.bf16.msra.mxu0 0
        %627 = vmatprep.subr.bf16.mxu0 0
        %628 = vmatpush1.bf16.msra.mxu0 0
        %629 = vmatprep.subr.bf16.mxu0 0
        %630 = vmatpush1.bf16.msra.mxu0 0
        %631 = vmatprep.subr.bf16.mxu0 0
        %632 = vmatpush1.bf16.msra.mxu0 0
        %633 = vmatprep.subr.bf16.mxu0 0
        %634 = vmatpush1.bf16.msra.mxu0 0
        %635 = vmatprep.subr.bf16.mxu0 0
        %636 = vmatpush1.bf16.msra.mxu0 0
        %637 = vmatprep.subr.bf16.mxu0 0
        %638 = vmatpush1.bf16.msra.mxu0 0
        %639 = vmatprep.subr.bf16.mxu0 0
        %640 = vmatpush1.bf16.msra.mxu0 0
        %641 = vmatprep.mubr.bf16.mxu0 0
        %642 = vmatmul.mubr.bf16.gmra.mrb[0].mxu0 %v607
        %v643 = vpop.f32.mrb[0].mxu0
        %v644 = vadd.f32 0.0, %v643
        %v645 = vpop.f32.mrb[0].mxu0
        %v646 = vpop.f32.mrb[0].mxu0
        %v647 = vpop.f32.mrb[0].mxu0
        %648 = vdwg.mxu0
        %v649 = vrcp.pop %v603
        %v650 = vmul.f32 %v644, %v649
        %651 = vrot.lane.b32.xlu0 %v434, 64
        %v652 = vpop.permute.xlu0 %651
        %653 = vrot.lane.b32.xlu0 %v435, 64
        %v654 = vpop.permute.xlu0 %653
        %v656 = vsel %vm302, %v652, 0
        %v659 = vsel %vm302, %v654, 0
        %661 = vmatprep.subr.bf16.mxu0 0
        %662 = vmatpush1.bf16.xpose.msra.mxu0 %v659
        %663 = vmatprep.subr.bf16.mxu0 0
        %664 = vmatpush1.bf16.xpose.msra.mxu0 0
        %665 = vmatprep.subr.bf16.mxu0 0
        %666 = vmatpush1.bf16.xpose.msra.mxu0 0
        %667 = vmatprep.subr.bf16.mxu0 0
        %668 = vmatpush1.bf16.xpose.msra.mxu0 0
        %669 = vmatprep.subr.bf16.mxu0 0
        %670 = vmatpush1.bf16.xpose.msra.mxu0 0
        %671 = vmatprep.subr.bf16.mxu0 0
        %672 = vmatpush1.bf16.xpose.msra.mxu0 0
        %673 = vmatprep.subr.bf16.mxu0 0
        %674 = vmatpush1.bf16.xpose.msra.mxu0 0
        %675 = vmatprep.subr.bf16.mxu0 0
        %676 = vmatpush1.bf16.xpose.msra.mxu0 0
        %677 = vmatprep.subr.bf16.mxu0 0
        %678 = vmatpush1.bf16.xpose.msra.mxu0 0
        %679 = vmatprep.subr.bf16.mxu0 0
        %680 = vmatpush1.bf16.xpose.msra.mxu0 0
        %681 = vmatprep.subr.bf16.mxu0 0
        %682 = vmatpush1.bf16.xpose.msra.mxu0 0
        %683 = vmatprep.subr.bf16.mxu0 0
        %684 = vmatpush1.bf16.xpose.msra.mxu0 0
        %685 = vmatprep.subr.bf16.mxu0 0
        %686 = vmatpush1.bf16.xpose.msra.mxu0 0
        %687 = vmatprep.subr.bf16.mxu0 0
        %688 = vmatpush1.bf16.xpose.msra.mxu0 0
        %689 = vmatprep.subr.bf16.mxu0 0
        %690 = vmatpush1.bf16.xpose.msra.mxu0 0
        %691 = vmatprep.subr.bf16.mxu0 0
        %692 = vmatpush1.bf16.xpose.msra.mxu0 0
        %693 = vmatprep.mubr.bf16.mxu0 0
        %694 = vmatmul.mubr.bf16.gmra.mrb[0].mxu0 %v656
        %v695 = vpop.f32.mrb[0].mxu0
        %v696 = vadd.f32 0.0, %v695
        %v697 = vpop.f32.mrb[0].mxu0
        %v698 = vpop.f32.mrb[0].mxu0
        %v699 = vpop.f32.mrb[0].mxu0
        %700 = vdwg.mxu0
        %v701 = vmul.f32 %v696, 0.17677669
        %v702 = vsel %vm483, %v701, -inf
        %703 = vmax.xlane.f32.xlu0 %v702
        %v704 = vpop.xlane.xlu0 %703
        %v705 = vsub.f32 %v701, %v704
        %v706 = vmul.f32 %v705, 1.442695
        %v707 = vpow.pop %v706
        %v708 = vsel %vm483, %v707, 0.0
        %709 = vadd.xlane.f32.xlu0 %v708
        %v710 = vpop.xlane.xlu0 %709
        %v711 = vpack.c.bf16 %v707, %v707
        %713 = vrot.lane.b32.xlu0 %v605, 96
        %v714 = vpop.permute.xlu0 %713
        %v717 = vsel %vm483, %v711, 0
        %719 = vmatprep.subr.bf16.mxu0 0
        %720 = vmatpush1.bf16.msra.mxu0 %v714
        %721 = vmatprep.subr.bf16.mxu0 0
        %722 = vmatpush1.bf16.msra.mxu0 0
        %723 = vmatprep.subr.bf16.mxu0 0
        %724 = vmatpush1.bf16.msra.mxu0 0
        %725 = vmatprep.subr.bf16.mxu0 0
        %726 = vmatpush1.bf16.msra.mxu0 0
        %727 = vmatprep.subr.bf16.mxu0 0
        %728 = vmatpush1.bf16.msra.mxu0 0
        %729 = vmatprep.subr.bf16.mxu0 0
        %730 = vmatpush1.bf16.msra.mxu0 0
        %731 = vmatprep.subr.bf16.mxu0 0
        %732 = vmatpush1.bf16.msra.mxu0 0
        %733 = vmatprep.subr.bf16.mxu0 0
        %734 = vmatpush1.bf16.msra.mxu0 0
        %735 = vmatprep.subr.bf16.mxu0 0
        %736 = vmatpush1.bf16.msra.mxu0 0
        %737 = vmatprep.subr.bf16.mxu0 0
        %738 = vmatpush1.bf16.msra.mxu0 0
        %739 = vmatprep.subr.bf16.mxu0 0
        %740 = vmatpush1.bf16.msra.mxu0 0
        %741 = vmatprep.subr.bf16.mxu0 0
        %742 = vmatpush1.bf16.msra.mxu0 0
        %743 = vmatprep.subr.bf16.mxu0 0
        %744 = vmatpush1.bf16.msra.mxu0 0
        %745 = vmatprep.subr.bf16.mxu0 0
        %746 = vmatpush1.bf16.msra.mxu0 0
        %747 = vmatprep.subr.bf16.mxu0 0
        %748 = vmatpush1.bf16.msra.mxu0 0
        %749 = vmatprep.subr.bf16.mxu0 0
        %750 = vmatpush1.bf16.msra.mxu0 0
        %751 = vmatprep.mubr.bf16.mxu0 0
        %752 = vmatmul.mubr.bf16.gmra.mrb[0].mxu0 %v717
        %v753 = vpop.f32.mrb[0].mxu0
        %v754 = vadd.f32 0.0, %v753
        %v755 = vpop.f32.mrb[0].mxu0
        %v756 = vpop.f32.mrb[0].mxu0
        %v757 = vpop.f32.mrb[0].mxu0
        %758 = vdwg.mxu0
        %v759 = vrcp.pop %v710
        %v760 = vmul.f32 %v754, %v759
        %762 = vrot.lane.b32.xlu0 %v650, 32
        %v763 = vpop.permute.xlu0 %762
        %766 = vrot.lane.b32.xlu0 %v760, 64
        %v767 = vpop.permute.xlu0 %766
        %v769 = vsel %vm302, %v542, %v763
        %vm770 = vcmask 523264
        %v771 = vsel %vm770, %v769, %v767
        %v772 = vpack.c.bf16 %v771, %v771
        %v773 = vld [vmem:[%s4] sm:$0xf]
        %v774 = vld [vmem:[%s4 + $0x4] sm:$0xf]
        %v775 = vld [vmem:[%s4 + $0x8] sm:$0xf]
        %v776 = vld [vmem:[%s4 + $0xc] sm:$0xf]
        %v777 = vld [vmem:[%s4 + $0x10] sm:$0xf]
        %v778 = vld [vmem:[%s4 + $0x14] sm:$0xf]
        %v779 = vld [vmem:[%s4 + $0x18] sm:$0xf]
        %v780 = vld [vmem:[%s4 + $0x1c] sm:$0xf]
        %v781 = vld [vmem:[%s4 + $0x20] sm:$0xf]
        %v782 = vld [vmem:[%s4 + $0x24] sm:$0xf]
        %v783 = vld [vmem:[%s4 + $0x28] sm:$0xf]
        %v784 = vld [vmem:[%s4 + $0x2c] sm:$0xf]
        %v785 = vld [vmem:[%s5] sm:$0x1]
        %v786 = vunpack.c.l.bf16 %v785
        %v787 = vlaneseq
        %v788 = vshrl.u32 %v787, 7
        %v789 = vsub.s32 0, %v788
        %v790 = vrot.slane %v786, %v789
        %v803 = vunpack.c.l.b16 %v773
        %v804 = vunpack.c.l.b16 %v774
        %v805 = vunpack.c.l.b16 %v775
        %v806 = vunpack.c.l.b16 %v776
        %v807 = vunpack.c.l.b16 %v777
        %v808 = vunpack.c.l.b16 %v778
        %v809 = vunpack.c.l.b16 %v779
        %v810 = vunpack.c.l.b16 %v780
        %v811 = vunpack.c.l.b16 %v781
        %v812 = vunpack.c.l.b16 %v782
        %v813 = vunpack.c.l.b16 %v783
        %v814 = vunpack.c.l.b16 %v784
        %v815 = vpack.c.b16 %v804, %v803
        %v816 = vpack.c.b16 %v806, %v805
        %v817 = vpack.c.b16 %v808, %v807
        %v818 = vpack.c.b16 %v810, %v809
        %v819 = vpack.c.b16 %v812, %v811
        %v820 = vpack.c.b16 %v814, %v813
        %vm827 = vcmask 785408
        %v829 = vsel %vm827, %v772, 0
        %831 = vmatprep.subr.bf16.mxu0 0
        %832 = vmatpush1.bf16.msra.mxu0 %v815
        %833 = vmatprep.subr.bf16.mxu0 0
        %834 = vmatpush1.bf16.msra.mxu0 %v816
        %835 = vmatprep.subr.bf16.mxu0 0
        %836 = vmatpush1.bf16.msra.mxu0 %v817
        %837 = vmatprep.subr.bf16.mxu0 0
        %838 = vmatpush1.bf16.msra.mxu0 %v818
        %839 = vmatprep.subr.bf16.mxu0 0
        %840 = vmatpush1.bf16.msra.mxu0 %v819
        %841 = vmatprep.subr.bf16.mxu0 0
        %842 = vmatpush1.bf16.msra.mxu0 %v820
        %843 = vmatprep.subr.bf16.mxu0 0
        %844 = vmatpush1.bf16.msra.mxu0 0
        %845 = vmatprep.subr.bf16.mxu0 0
        %846 = vmatpush1.bf16.msra.mxu0 0
        %847 = vmatprep.subr.bf16.mxu0 0
        %848 = vmatpush1.bf16.msra.mxu0 0
        %849 = vmatprep.subr.bf16.mxu0 0
        %850 = vmatpush1.bf16.msra.mxu0 0
        %851 = vmatprep.subr.bf16.mxu0 0
        %852 = vmatpush1.bf16.msra.mxu0 0
        %853 = vmatprep.subr.bf16.mxu0 0
        %854 = vmatpush1.bf16.msra.mxu0 0
        %855 = vmatprep.subr.bf16.mxu0 0
        %856 = vmatpush1.bf16.msra.mxu0 0
        %857 = vmatprep.subr.bf16.mxu0 0
        %858 = vmatpush1.bf16.msra.mxu0 0
        %859 = vmatprep.subr.bf16.mxu0 0
        %860 = vmatpush1.bf16.msra.mxu0 0
        %861 = vmatprep.subr.bf16.mxu0 0
        %862 = vmatpush1.bf16.msra.mxu0 0
        %863 = vmatprep.mubr.bf16.mxu0 0
        %864 = vmatmul.mubr.bf16.gmra.mrb[0].mxu0 %v829
        %v865 = vpop.f32.mrb[0].mxu0
        %v866 = vadd.f32 %v790, %v865
        %v867 = vpop.f32.mrb[0].mxu0
        %v868 = vpop.f32.mrb[0].mxu0
        %v869 = vpop.f32.mrb[0].mxu0
        %870 = vdwg.mxu0
        %v871 = vpack.c.bf16 %v866, %v866
        %vm872 = vcmask 257024
        %873 = vst.msk [vmem:[%s272] sm:$0xf] %vm872, %v871
        %s874 = sand.u32 %s165, 1
        %s875 = scalar_lea.sflag [#allocation4], %s874
        %s876 = sand.u32 %s165, 1
        %s877 = smul.addr %s876, 4
        %s878 = scalar_lea.vmem [#allocation5], %s877
        // Predicated region
        $region49: #{tpu_custom_call.1} parent=43 // pred_check
          %p879 = pneg %p175
        $region50: #{tpu_custom_call.1} parent=43 // pred_check_branch
          %881 = sbr.rel (%p879) target = $region52
        $region51: #{tpu_custom_call.1} parent=43 // pred_region
          %s883 = ssub.s32 64, 64
          %884 = vsyncadd %s875, %s883
          %s885 = smul.addr %s21, 64
          %s886 = scalar_lea.hbm %s6, %s885
          %s888 = sshll.u32 %s878, 4
          %s889 = int_to_ptr.vmem [resolvable:$true] %s888
          %891 = dma.vmem_to_hbm [thread:$0]  %s889, 64, %s886, %s875
        $region52: #{tpu_custom_call.1} parent=43 // pred_fallthru
          _
      $region44: #{tpu_custom_call.1} parent=5 // pred_fallthru
        _
      %p892 = scmp.le.s32.totalorder 2, %s16
      // Predicated region
      $region53: #{tpu_custom_call.1} parent=5 // pred_check
        %p893 = pneg %p892
      $region54: #{tpu_custom_call.1} parent=5 // pred_check_branch
        %895 = sbr.rel (%p893) target = $region56
      $region55: #{tpu_custom_call.1} parent=5 // pred_region
        %s896 = ssub.s32 %s16, 2
        // Predicated region
        $region57: #{tpu_custom_call.1} parent=55 // pred_check
          %p897 = pneg %p181
        $region58: #{tpu_custom_call.1} parent=55 // pred_check_branch
          %899 = sbr.rel (%p897) target = $region60
        $region59: #{tpu_custom_call.1} parent=55 // pred_region
          %s900 = sand.u32 %s166, 1
          %s901 = scalar_lea.sflag [#allocation4], %s900
          %s902 = sand.u32 %s166, 1
          %s903 = smul.addr %s902, 4
          %s904 = scalar_lea.vmem [#allocation5], %s903
          %905 = dma.done %s901, 64
        $region60: #{tpu_custom_call.1} parent=55 // pred_fallthru
          _
      $region56: #{tpu_custom_call.1} parent=5 // pred_fallthru
        _
    $region6: #{tpu_custom_call.1} parent=1 // loop_footer
      %s20 = sadd.s32 1, %s16
    $region7: #{tpu_custom_call.1} parent=1 // loop_footer_branch
      %15 = sbr.rel target = $region3
    $region8: #{tpu_custom_call.1} parent=1 // loop_exit
      _
    %906 = vsyncpa [#allocation3], 1
    %s907 = scalar_lea.sflag [#allocation3], 1
    %908 = vsyncpa %s907, 1
    %909 = vsyncpa [#allocation4], 1
    %s910 = scalar_lea.sflag [#allocation4], 1
    %911 = vsyncpa %s910, 1

</llo_original>
